<compile_context>
chip_gen: v7x
topology: tpu7x:2x2x1
jax: 0.10.0
libtpu: 0.0.40
codegen_flags: <defaults>
</compile_context>

<pallas_src>
import numpy as np
import jax
import jax.numpy as jnp
from jax.experimental import pallas as pl
from jax.experimental.pallas import tpu as pltpu


# ----------------------------- parameter setup ------------------------------

LANE = 128


def _round_up(x: int, m: int) -> int:
    return ((x + m - 1) // m) * m


def _hz_to_mel(f):
    # torchaudio "htk" mel scale
    return 2595.0 * np.log10(1.0 + f / 700.0)


def _mel_to_hz(m):
    return 700.0 * (10.0 ** (m / 2595.0) - 1.0)


def make_mel_filterbank(sample_rate: int, n_fft: int, n_mels: int) -> np.ndarray:
    """Replicates torchaudio.functional.melscale_fbanks (htk, norm=None)."""
    n_freqs = n_fft // 2 + 1
    f_max = float(sample_rate // 2)
    all_freqs = np.linspace(0.0, f_max, n_freqs)
    m_pts = np.linspace(_hz_to_mel(0.0), _hz_to_mel(f_max), n_mels + 2)
    f_pts = _mel_to_hz(m_pts)
    f_diff = f_pts[1:] - f_pts[:-1]                      # (n_mels+1,)
    slopes = f_pts[None, :] - all_freqs[:, None]         # (n_freqs, n_mels+2)
    down = (-1.0 * slopes[:, :-2]) / f_diff[:-1]
    up = slopes[:, 2:] / f_diff[1:]
    fb = np.maximum(0.0, np.minimum(down, up))
    return fb.astype(np.float32)                         # (n_freqs, n_mels)


def make_windowed_dft(n_fft: int, window: np.ndarray):
    """Real DFT basis with the analysis window folded in, shapes (n_fft, n_freqs)."""
    n_freqs = n_fft // 2 + 1
    n = np.arange(n_fft, dtype=np.float64)[:, None]
    f = np.arange(n_freqs, dtype=np.float64)[None, :]
    ang = 2.0 * np.pi * n * f / n_fft
    cos_m = (window[:, None] * np.cos(ang)).astype(np.float32)
    sin_m = (window[:, None] * np.sin(ang)).astype(np.float32)
    return cos_m, sin_m


# ------------------------------- Pallas kernel -------------------------------

def _logmel_kernel(frames_ref, cossin_ref, fb_ref, out_ref):
    # frames_ref: (TM, n_fft)        windowing folded into the DFT basis
    # cossin_ref: (n_fft, 2*F_pad)   [win*cos | win*sin], zero-padded columns
    # fb_ref:     (F_pad, N_pad)     mel filterbank, zero-padded rows/cols
    # out_ref:    (TM, N_pad)        lane-dense output tile
    x = frames_ref[...]
    spec = jnp.dot(x, cossin_ref[...], preferred_element_type=jnp.float32)
    f_pad = cossin_ref.shape[1] // 2
    re = spec[:, :f_pad]                                 # lane-aligned split
    im = spec[:, f_pad:]
    power = re * re + im * im                            # |X|^2  (power=2.0)
    mel = jnp.dot(power, fb_ref[...], preferred_element_type=jnp.float32)
    # SpecScaler: log(clamp(x, 1e-9, 1e9))
    out_ref[...] = jnp.log(jnp.clip(mel, 1e-9, 1e9))


# --------------------------------- wrapper -----------------------------------

def _pick_row_tile(M: int) -> int:
    """Largest row tile with >=4 grid steps (keeps pad waste <=25%)."""
    for tm in (1024, 512, 256):
        if M >= 4 * tm:
            return tm
    return min(256, _round_up(M, 8))


class FeatureExtractor:
    """JAX/Pallas equivalent of the PyTorch FeatureExtractor module."""

    def __init__(self, sample_rate: int, features: int):
        if sample_rate % 200 != 0:
            raise ValueError("sample_rate must be divisible by 200 so that "
                             "hop_length and n_fft are integral.")
        self.sample_rate = sample_rate
        self.features = features
        self.hop_length = sample_rate // 100
        self.n_fft = sample_rate // 40                   # == 2.5 * hop_length
        self.win_length = self.n_fft
        self.n_freqs = self.n_fft // 2 + 1

        # lane-dense padded widths
        self.f_pad = _round_up(self.n_freqs, LANE)
        self.n_pad = _round_up(self.features, LANE)

        # Hann window (periodic, torch.hann_window default), folded into DFT basis
        n = np.arange(self.win_length, dtype=np.float64)
        window = 0.5 * (1.0 - np.cos(2.0 * np.pi * n / self.win_length))

        cos_m, sin_m = make_windowed_dft(self.n_fft, window)
        cossin = np.zeros((self.n_fft, 2 * self.f_pad), dtype=np.float32)
        cossin[:, : self.n_freqs] = cos_m
        cossin[:, self.f_pad : self.f_pad + self.n_freqs] = sin_m
        self.cossin = jnp.asarray(cossin)

        fb = make_mel_filterbank(sample_rate, self.n_fft, features)
        fb_pad = np.zeros((self.f_pad, self.n_pad), dtype=np.float32)
        fb_pad[: self.n_freqs, : features] = fb
        self.fb = jnp.asarray(fb_pad)

    def out_len(self, input_lengths):
        # torch returns int64 (.long()); JAX default is int32 (x64 disabled)
        return (input_lengths // self.hop_length + 1).astype(jnp.int32)

    def _frame(self, input_signal):
        """center=True reflect-pad framing via strided slices (no XLA gather)."""
        B, T = input_signal.shape
        pad = self.n_fft // 2
        hop = self.hop_length
        padded = jnp.pad(input_signal.astype(jnp.float32),
                         ((0, 0), (pad, pad)), mode="reflect")
        L = T + 2 * pad
        n_frames = 1 + (L - self.n_fft) // hop

        # n_fft == 5 * (hop // 2): view the signal as half-hop-wide rows; frame r
        # is the concatenation of rows 2r, 2r+1, ..., 2r+4.
        w = hop // 2
        L_pad = _round_up(L, w)
        if L_pad != L:
            padded = jnp.pad(padded, ((0, 0), (0, L_pad - L)))
        s2 = padded.reshape(B, L_pad // w, w)
        stop = 2 * n_frames - 1
        parts = [jax.lax.slice_in_dim(s2, q, q + stop, stride=2, axis=1)
                 for q in range(5)]                      # each (B, n_frames, w)
        frames = jnp.concatenate(parts, axis=2)          # (B, n_frames, n_fft)
        return frames.reshape(B * n_frames, self.n_fft), n_frames

    def __call__(self, input_signal, length):
        B, _ = input_signal.shape
        # TODO(synk): fold the framing itself into the Pallas kernel (shifted
        # K-chunk matmuls over a half-hop-wide signal view) to avoid
        # materializing the ~2.5x-oversized frames array in HBM.
        frames, n_frames = self._frame(input_signal)

        M = B * n_frames
        TM = _pick_row_tile(M)
        M_pad = _round_up(M, TM)
        if M_pad != M:
            frames = jnp.pad(frames, ((0, M_pad - M), (0, 0)))

        # Explicit VMEM budget (double-buffered frames/out tiles + constants)
        # with headroom, clamped to v7x's 64 MiB physical VMEM.
        vmem_bytes = 4 * (2 * TM * self.n_fft
                          + 2 * self.n_fft * 2 * self.f_pad
                          + 2 * self.f_pad * self.n_pad
                          + 2 * TM * self.n_pad
                          + TM * 3 * self.f_pad)          # in-kernel temporaries
        vmem_limit = int(min(max(2 * vmem_bytes, 32 * 1024 * 1024),
                             64 * 1024 * 1024))

        cost = pl.CostEstimate(
            flops=2 * M_pad * (self.n_fft * 2 * self.f_pad
                               + self.f_pad * self.n_pad),
            transcendentals=M_pad * self.n_pad,
            bytes_accessed=4 * (M_pad * self.n_fft
                                + self.n_fft * 2 * self.f_pad
                                + self.f_pad * self.n_pad
                                + M_pad * self.n_pad))

        out = pl.pallas_call(
            _logmel_kernel,
            out_shape=jax.ShapeDtypeStruct((M_pad, self.n_pad), jnp.float32),
            grid=(M_pad // TM,),
            in_specs=[
                pl.BlockSpec((TM, self.n_fft), lambda i: (i, 0)),
                pl.BlockSpec((self.n_fft, 2 * self.f_pad), lambda i: (0, 0)),
                pl.BlockSpec((self.f_pad, self.n_pad), lambda i: (0, 0)),
            ],
            out_specs=pl.BlockSpec((TM, self.n_pad), lambda i: (i, 0)),
            compiler_params=pltpu.CompilerParams(
                dimension_semantics=("parallel",),
                vmem_limit_bytes=vmem_limit),
            cost_estimate=cost,
        )(frames, self.cossin, self.fb)

        out = out[:M, : self.features].reshape(B, n_frames, self.features)
        out = jnp.transpose(out, (0, 2, 1))              # (B, n_mels, n_frames)
        return out, self.out_len(length)


# ----------------------------------- main -------------------------------------

if __name__ == "__main__":
    # Small shapes consistent with the module: sample_rate must be divisible by
    # 200 so that hop_length and n_fft are integral.  sample_rate=1600 gives
    # n_fft=40, hop=16.  batch=2, T=128 samples, features(n_mels)=8.
    sample_rate = 1600
    features = 8
    B, T = 2, 128

    key = jax.random.PRNGKey(0)
    k_sig, _ = jax.random.split(key)
    input_signal = jax.random.normal(k_sig, (B, T), dtype=jnp.float32)
    length = jnp.array([T, T - 32], dtype=jnp.int32)

    fe = FeatureExtractor(sample_rate=sample_rate, features=features)
    spec, out_lens = fe(input_signal, length)
    spec = jax.block_until_ready(spec)
    out_lens = jax.block_until_ready(out_lens)

    expected_frames = T // fe.hop_length + 1
    assert spec.shape == (B, features, expected_frames), spec.shape
    assert out_lens.shape == (B,), out_lens.shape
    assert bool(jnp.all(jnp.isfinite(spec)))
    print("KERNEL_OK")
</pallas_src>

<mosaic_0001>
module attributes {stable_mosaic.version = 11 : i64} {
  func.func @_logmel_kernel(%arg0: i32, %arg1: memref<24x40xf32, #tpu.memory_space<vmem>>, %arg2: memref<40x256xf32, #tpu.memory_space<vmem>>, %arg3: memref<128x128xf32, #tpu.memory_space<vmem>>, %arg4: memref<24x128xf32, #tpu.memory_space<vmem>>) attributes {dimension_semantics = [#tpu.dimension_semantics<parallel>], iteration_bounds = array<i64: 1>, scalar_prefetch = 0 : i64, scratch_operands = 0 : i64, tpu.core_type = #tpu.core_type<tc>, window_params = [{transform_indices = @transform_0, window_bounds = array<i64: 24, 40>}, {pipeline_mode = #tpu.pipeline_mode<synchronous>, transform_indices = @transform_1, window_bounds = array<i64: 40, 256>}, {pipeline_mode = #tpu.pipeline_mode<synchronous>, transform_indices = @transform_2, window_bounds = array<i64: 128, 128>}, {transform_indices = @transform_3, window_bounds = array<i64: 24, 128>}]} {
    %c0 = arith.constant 0 : index
    %c0_0 = arith.constant 0 : index
    %0 = vector.load %arg1[%c0, %c0_0] : memref<24x40xf32, #tpu.memory_space<vmem>>, vector<24x40xf32>
    %c0_1 = arith.constant 0 : index
    %c0_2 = arith.constant 0 : index
    %1 = vector.load %arg2[%c0_1, %c0_2] : memref<40x256xf32, #tpu.memory_space<vmem>>, vector<40x256xf32>
    %cst = arith.constant dense<0.000000e+00> : vector<24x256xf32>
    %2 = tpu.matmul %0, %1, %cst {dimension_numbers = #tpu.dot_dimension_numbers<[1], [0], [0], [1], [0, 0, 1, 1], [], []>} : vector<24x40xf32>, vector<40x256xf32>, vector<24x256xf32> -> vector<24x256xf32>
    %3 = vector.extract_strided_slice %2 {offsets = [0, 0], sizes = [24, 128], strides = [1, 1]} : vector<24x256xf32> to vector<24x128xf32>
    %4 = vector.extract_strided_slice %2 {offsets = [0, 128], sizes = [24, 128], strides = [1, 1]} : vector<24x256xf32> to vector<24x128xf32>
    %5 = arith.mulf %3, %3 : vector<24x128xf32>
    %6 = arith.mulf %4, %4 : vector<24x128xf32>
    %7 = arith.addf %5, %6 : vector<24x128xf32>
    %c0_3 = arith.constant 0 : index
    %c0_4 = arith.constant 0 : index
    %8 = vector.load %arg3[%c0_3, %c0_4] : memref<128x128xf32, #tpu.memory_space<vmem>>, vector<128x128xf32>
    %cst_5 = arith.constant dense<0.000000e+00> : vector<24x128xf32>
    %9 = tpu.matmul %7, %8, %cst_5 {dimension_numbers = #tpu.dot_dimension_numbers<[1], [0], [0], [1], [0, 0, 1, 1], [], []>} : vector<24x128xf32>, vector<128x128xf32>, vector<24x128xf32> -> vector<24x128xf32>
    %cst_6 = arith.constant 9.99999971E-10 : f32
    %cst_7 = arith.constant 1.000000e+09 : f32
    %10 = vector.broadcast %cst_6 : f32 to vector<24x128xf32>
    %11 = arith.maximumf %10, %9 : vector<24x128xf32>
    %12 = vector.broadcast %cst_7 : f32 to vector<24x128xf32>
    %13 = arith.minimumf %12, %11 : vector<24x128xf32>
    %14 = math.log %13 : vector<24x128xf32>
    %c0_8 = arith.constant 0 : index
    %c0_9 = arith.constant 0 : index
    %15 = vector.load %arg4[%c0_8, %c0_9] : memref<24x128xf32, #tpu.memory_space<vmem>>, vector<24x128xf32>
    tpu.vector_store %arg4[%c0_8, %c0_9], %14 {strides = array<i32>} : memref<24x128xf32, #tpu.memory_space<vmem>>, vector<24x128xf32>,
    return
  }
  func.func @transform_0(%arg0: i32) -> (i32, i32) {
    %c0_i32 = arith.constant 0 : i32
    %c0_i32_0 = arith.constant 0 : i32
    return %arg0, %c0_i32 : i32, i32
  }
  func.func @transform_1(%arg0: i32) -> (i32, i32) {
    %c0_i32 = arith.constant 0 : i32
    %c0_i32_0 = arith.constant 0 : i32
    %c0_i32_1 = arith.constant 0 : i32
    return %c0_i32, %c0_i32_0 : i32, i32
  }
  func.func @transform_2(%arg0: i32) -> (i32, i32) {
    %c0_i32 = arith.constant 0 : i32
    %c0_i32_0 = arith.constant 0 : i32
    %c0_i32_1 = arith.constant 0 : i32
    return %c0_i32, %c0_i32_0 : i32, i32
  }
  func.func @transform_3(%arg0: i32) -> (i32, i32) {
    %c0_i32 = arith.constant 0 : i32
    %c0_i32_0 = arith.constant 0 : i32
    return %arg0, %c0_i32 : i32, i32
  }
}

</mosaic_0001>

<llo_original>
// kernel: tpu_custom_call.1
$region0: #{tpu_custom_call.1}
  #allocation0 [shape = 'u32[]', space=smem, size = 0x4, offset = 0x4, fixed_abs, tag = 'smem constant byte address 0x4 - core index']
  #allocation1 [shape = 'u32[144,128]{1,0:T(1,128)}', space=vmem, size = 0x12000, scoped, tag = 'internal scratch']
  %s0 = inlined_call_operand.hbm [shape: f32[24,40], index: 0, kind: input, shape index: {}]
  %s1 = inlined_call_operand.hbm [shape: f32[40,256], index: 1, kind: input, shape index: {}]
  %s2 = inlined_call_operand.hbm [shape: f32[128,128], index: 2, kind: input, shape index: {}]
  %s3 = inlined_call_operand.hbm [shape: f32[24,128], index: 3, kind: output, shape index: {}]
  %s4 = sld [smem:[#allocation0]]
  $region34: #{tpu_custom_call.1} parent=0
    _
  %s6 = ssub.s32 1, %s4
  %s7 = scalar_select 0, %s6, %s4
  $region1: #{tpu_custom_call.1} parent=0
    #allocation2 [shape = 'u8[12288]{0}', space=vmem, size = 0x3000, scoped, tag = 'input window, operand 0, single buffered']
    #allocation3 [shape = 's32[1]{0}', space=sflag, size = 0x4, scoped, tag = 'scoped memory for tpu_custom_call.1']
    #allocation4 [shape = 's32[1]{0}', space=sflag, size = 0x4, scoped, tag = 'scoped memory for tpu_custom_call.1']
    #allocation5 [shape = 'u8[40960]{0}', space=vmem, size = 0xa000, scoped, tag = 'input window, operand 1, single buffered']
    #allocation6 [shape = 's32[1]{0}', space=sflag, size = 0x4, scoped, tag = 'scoped memory for tpu_custom_call.1']
    #allocation7 [shape = 'u8[65536]{0}', space=vmem, size = 0x10000, scoped, tag = 'input window, operand 2, single buffered']
    #allocation8 [shape = 'u8[12288]{0}', space=vmem, size = 0x3000, scoped, tag = 'output window, operand 0, single buffered']
    %8 = vsyncpa [#allocation3], 0
    %9 = vsyncpa [#allocation6], 0
    %10 = vsyncpa [#allocation4], 0
    // Predicated region
    $region2: #{tpu_custom_call.1} parent=1 // pred_check
      _
    $region3: #{tpu_custom_call.1} parent=1 // pred_check_branch
      %12 = sbr.rel (0) target = $region5
    $region4: #{tpu_custom_call.1} parent=1 // pred_region
      %s14 = ssub.s32 384, 384
      %15 = vsyncadd [#allocation3], %s14
      %s16 = sshll.u32 [#allocation2], 4
      %s17 = int_to_ptr.vmem [resolvable:$true] %s16
      %22 = dma.hbm_to_vmem [thread:$0]  %s0, 384, %s17, [#allocation3], 128, 128, 8
    $region5: #{tpu_custom_call.1} parent=1 // pred_fallthru
      _
    // Predicated region
    $region6: #{tpu_custom_call.1} parent=1 // pred_check
      _
    $region7: #{tpu_custom_call.1} parent=1 // pred_check_branch
      %24 = sbr.rel (0) target = $region9
    $region8: #{tpu_custom_call.1} parent=1 // pred_region
      %s26 = ssub.s32 1280, 1280
      %27 = vsyncadd [#allocation6], %s26
      %s28 = sshll.u32 [#allocation5], 4
      %s29 = int_to_ptr.vmem [resolvable:$true] %s28
      %34 = dma.hbm_to_vmem [thread:$0]  %s1, 1280, %s29, [#allocation6], 256, 256, 16
    $region9: #{tpu_custom_call.1} parent=1 // pred_fallthru
      _
    // Predicated region
    $region10: #{tpu_custom_call.1} parent=1 // pred_check
      _
    $region11: #{tpu_custom_call.1} parent=1 // pred_check_branch
      %36 = sbr.rel (0) target = $region13
    $region12: #{tpu_custom_call.1} parent=1 // pred_region
      %s38 = ssub.s32 2048, 2048
      %39 = vsyncadd [#allocation6], %s38
      %s40 = sshll.u32 [#allocation7], 4
      %s41 = int_to_ptr.vmem [resolvable:$true] %s40
      %46 = dma.hbm_to_vmem [thread:$0]  %s2, 2048, %s41, [#allocation6], 128, 128, 8
    $region13: #{tpu_custom_call.1} parent=1 // pred_fallthru
      _
    // Predicated region
    $region14: #{tpu_custom_call.1} parent=1 // pred_check
      _
    $region15: #{tpu_custom_call.1} parent=1 // pred_check_branch
      %48 = sbr.rel (0) target = $region17
    $region16: #{tpu_custom_call.1} parent=1 // pred_region
      %49 = dma.done [#allocation3], 384
    $region17: #{tpu_custom_call.1} parent=1 // pred_fallthru
      _
    // Predicated region
    $region18: #{tpu_custom_call.1} parent=1 // pred_check
      _
    $region19: #{tpu_custom_call.1} parent=1 // pred_check_branch
      %51 = sbr.rel (0) target = $region21
    $region20: #{tpu_custom_call.1} parent=1 // pred_region
      %52 = dma.done [#allocation6], 1280
    $region21: #{tpu_custom_call.1} parent=1 // pred_fallthru
      _
    // Predicated region
    $region22: #{tpu_custom_call.1} parent=1 // pred_check
      _
    $region23: #{tpu_custom_call.1} parent=1 // pred_check_branch
      %54 = sbr.rel (0) target = $region25
    $region24: #{tpu_custom_call.1} parent=1 // pred_region
      %55 = dma.done [#allocation6], 2048
    $region25: #{tpu_custom_call.1} parent=1 // pred_fallthru
      _
    %v56 = vld [vmem:[#allocation2] sm:$0xff]
    %v57 = vld [vmem:[#allocation2 + $0x8] sm:$0xff]
    %v58 = vld [vmem:[#allocation2 + $0x10] sm:$0xff]
    %v59 = vld [vmem:[#allocation5] sm:$0xff]
    %v60 = vld [vmem:[#allocation5 + $0x8] sm:$0xff]
    %v61 = vld [vmem:[#allocation5 + $0x10] sm:$0xff]
    %v62 = vld [vmem:[#allocation5 + $0x18] sm:$0xff]
    %v63 = vld [vmem:[#allocation5 + $0x20] sm:$0xff]
    %v64 = vld [vmem:[#allocation5 + $0x28] sm:$0xff]
    %v65 = vld [vmem:[#allocation5 + $0x30] sm:$0xff]
    %v66 = vld [vmem:[#allocation5 + $0x38] sm:$0xff]
    %v67 = vld [vmem:[#allocation5 + $0x40] sm:$0xff]
    %v68 = vld [vmem:[#allocation5 + $0x48] sm:$0xff]
    %vm69 = vcmask 326656
    %v71 = vsel %vm69, %v56, 0
    %v74 = vsel %vm69, %v57, 0
    %v77 = vsel %vm69, %v58, 0
    %79 = vmatprep.subr.mxu0 %v60
    %80 = vmatpush1.msra.mxu0 %v59
    %81 = vmatprep.subr.mxu0 %v62
    %82 = vmatpush1.msra.mxu0 %v61
    %83 = vmatprep.subr.mxu0 %v64
    %84 = vmatpush1.msra.mxu0 %v63
    %85 = vmatprep.subr.mxu0 %v66
    %86 = vmatpush1.msra.mxu0 %v65
    %87 = vmatprep.subr.mxu0 %v68
    %88 = vmatpush1.msra.mxu0 %v67
    %89 = vmatprep.subr.mxu0 0.0
    %90 = vmatpush1.msra.mxu0 0.0
    %91 = vmatprep.subr.mxu0 0.0
    %92 = vmatpush1.msra.mxu0 0.0
    %93 = vmatprep.subr.mxu0 0.0
    %94 = vmatpush1.msra.mxu0 0.0
    %95 = vmatprep.subr.mxu0 0.0
    %96 = vmatpush1.msra.mxu0 0.0
    %97 = vmatprep.subr.mxu0 0.0
    %98 = vmatpush1.msra.mxu0 0.0
    %99 = vmatprep.subr.mxu0 0.0
    %100 = vmatpush1.msra.mxu0 0.0
    %101 = vmatprep.subr.mxu0 0.0
    %102 = vmatpush1.msra.mxu0 0.0
    %103 = vmatprep.subr.mxu0 0.0
    %104 = vmatpush1.msra.mxu0 0.0
    %105 = vmatprep.subr.mxu0 0.0
    %106 = vmatpush1.msra.mxu0 0.0
    %107 = vmatprep.subr.mxu0 0.0
    %108 = vmatpush1.msra.mxu0 0.0
    %109 = vmatprep.subr.mxu0 0.0
    %110 = vmatpush1.msra.mxu0 0.0
    %111 = vmatprep.subr.mxu0 0.0
    %112 = vmatpush1.msra.mxu0 0.0
    %113 = vmatprep.subr.mxu0 0.0
    %114 = vmatpush1.msra.mxu0 0.0
    %115 = vmatprep.subr.mxu0 0.0
    %116 = vmatpush1.msra.mxu0 0.0
    %117 = vmatprep.subr.mxu0 0.0
    %118 = vmatpush1.msra.mxu0 0.0
    %119 = vmatprep.subr.mxu0 0.0
    %120 = vmatpush1.msra.mxu0 0.0
    %121 = vmatprep.subr.mxu0 0.0
    %122 = vmatpush1.msra.mxu0 0.0
    %123 = vmatprep.subr.mxu0 0.0
    %124 = vmatpush1.msra.mxu0 0.0
    %125 = vmatprep.subr.mxu0 0.0
    %126 = vmatpush1.msra.mxu0 0.0
    %127 = vmatprep.subr.mxu0 0.0
    %128 = vmatpush1.msra.mxu0 0.0
    %129 = vmatprep.subr.mxu0 0.0
    %130 = vmatpush1.msra.mxu0 0.0
    %131 = vmatprep.subr.mxu0 0.0
    %132 = vmatpush1.msra.mxu0 0.0
    %133 = vmatprep.subr.mxu0 0.0
    %134 = vmatpush1.msra.mxu0 0.0
    %135 = vmatprep.subr.mxu0 0.0
    %136 = vmatpush1.msra.mxu0 0.0
    %137 = vmatprep.subr.mxu0 0.0
    %138 = vmatpush1.msra.mxu0 0.0
    %139 = vmatprep.subr.mxu0 0.0
    %140 = vmatpush1.msra.mxu0 0.0
    %141 = vmatprep.subr.mxu0 0.0
    %142 = vmatpush1.msra.mxu0 0.0
    %143 = vmatprep.mubr.f32.mxu0 0.0
    %144 = vmatmul.mubr.f32.gmra.mrb[0].mxu0 %v71
    %v145 = vpop.f32.mrb[0].mxu0
    %v146 = vadd.f32 0.0, %v145
    %v147 = vpop.f32.mrb[0].mxu0
    %v148 = vadd.f32 0.0, %v147
    %149 = vmatprep.mubr.f32.mxu0 0.0
    %150 = vmatmul.mubr.f32.gmra.mrb[0].mxu0 %v74
    %v151 = vpop.f32.mrb[0].mxu0
    %v152 = vadd.f32 0.0, %v151
    %v153 = vpop.f32.mrb[0].mxu0
    %v154 = vadd.f32 0.0, %v153
    %155 = vmatprep.mubr.f32.mxu0 0.0
    %156 = vmatmul.mubr.f32.gmra.mrb[0].mxu0 %v77
    %v157 = vpop.f32.mrb[0].mxu0
    %v158 = vadd.f32 0.0, %v157
    %v159 = vpop.f32.mrb[0].mxu0
    %v160 = vadd.f32 0.0, %v159
    %161 = vdwg.mxu0
    %v162 = vmul.f32 %v146, %v146
    %v163 = vmul.f32 %v152, %v152
    %v164 = vmul.f32 %v158, %v158
    %v165 = vmul.f32 %v148, %v148
    %v166 = vmul.f32 %v154, %v154
    %v167 = vmul.f32 %v160, %v160
    %v168 = vadd.f32 %v162, %v165
    %v169 = vadd.f32 %v163, %v166
    %v170 = vadd.f32 %v164, %v167
    %v171 = vld [vmem:[#allocation7] sm:$0xff]
    %v172 = vld [vmem:[#allocation7 + $0x8] sm:$0xff]
    %v173 = vld [vmem:[#allocation7 + $0x10] sm:$0xff]
    %v174 = vld [vmem:[#allocation7 + $0x18] sm:$0xff]
    %v175 = vld [vmem:[#allocation7 + $0x20] sm:$0xff]
    %v176 = vld [vmem:[#allocation7 + $0x28] sm:$0xff]
    %v177 = vld [vmem:[#allocation7 + $0x30] sm:$0xff]
    %v178 = vld [vmem:[#allocation7 + $0x38] sm:$0xff]
    %v179 = vld [vmem:[#allocation7 + $0x40] sm:$0xff]
    %v180 = vld [vmem:[#allocation7 + $0x48] sm:$0xff]
    %v181 = vld [vmem:[#allocation7 + $0x50] sm:$0xff]
    %v182 = vld [vmem:[#allocation7 + $0x58] sm:$0xff]
    %v183 = vld [vmem:[#allocation7 + $0x60] sm:$0xff]
    %v184 = vld [vmem:[#allocation7 + $0x68] sm:$0xff]
    %v185 = vld [vmem:[#allocation7 + $0x70] sm:$0xff]
    %v186 = vld [vmem:[#allocation7 + $0x78] sm:$0xff]
    %187 = vmatprep.subr.mxu0 0.0
    %188 = vmatpush1.msra.mxu0 %v171
    %189 = vmatprep.subr.mxu0 0.0
    %190 = vmatpush1.msra.mxu0 %v172
    %191 = vmatprep.subr.mxu0 0.0
    %192 = vmatpush1.msra.mxu0 %v173
    %193 = vmatprep.subr.mxu0 0.0
    %194 = vmatpush1.msra.mxu0 %v174
    %195 = vmatprep.subr.mxu0 0.0
    %196 = vmatpush1.msra.mxu0 %v175
    %197 = vmatprep.subr.mxu0 0.0
    %198 = vmatpush1.msra.mxu0 %v176
    %199 = vmatprep.subr.mxu0 0.0
    %200 = vmatpush1.msra.mxu0 %v177
    %201 = vmatprep.subr.mxu0 0.0
    %202 = vmatpush1.msra.mxu0 %v178
    %203 = vmatprep.subr.mxu0 0.0
    %204 = vmatpush1.msra.mxu0 %v179
    %205 = vmatprep.subr.mxu0 0.0
    %206 = vmatpush1.msra.mxu0 %v180
    %207 = vmatprep.subr.mxu0 0.0
    %208 = vmatpush1.msra.mxu0 %v181
    %209 = vmatprep.subr.mxu0 0.0
    %210 = vmatpush1.msra.mxu0 %v182
    %211 = vmatprep.subr.mxu0 0.0
    %212 = vmatpush1.msra.mxu0 %v183
    %213 = vmatprep.subr.mxu0 0.0
    %214 = vmatpush1.msra.mxu0 %v184
    %215 = vmatprep.subr.mxu0 0.0
    %216 = vmatpush1.msra.mxu0 %v185
    %217 = vmatprep.subr.mxu0 0.0
    %218 = vmatpush1.msra.mxu0 %v186
    %219 = vmatprep.subr.mxu0 0.0
    %220 = vmatpush1.msra.mxu0 0.0
    %221 = vmatprep.subr.mxu0 0.0
    %222 = vmatpush1.msra.mxu0 0.0
    %223 = vmatprep.subr.mxu0 0.0
    %224 = vmatpush1.msra.mxu0 0.0
    %225 = vmatprep.subr.mxu0 0.0
    %226 = vmatpush1.msra.mxu0 0.0
    %227 = vmatprep.subr.mxu0 0.0
    %228 = vmatpush1.msra.mxu0 0.0
    %229 = vmatprep.subr.mxu0 0.0
    %230 = vmatpush1.msra.mxu0 0.0
    %231 = vmatprep.subr.mxu0 0.0
    %232 = vmatpush1.msra.mxu0 0.0
    %233 = vmatprep.subr.mxu0 0.0
    %234 = vmatpush1.msra.mxu0 0.0
    %235 = vmatprep.subr.mxu0 0.0
    %236 = vmatpush1.msra.mxu0 0.0
    %237 = vmatprep.subr.mxu0 0.0
    %238 = vmatpush1.msra.mxu0 0.0
    %239 = vmatprep.subr.mxu0 0.0
    %240 = vmatpush1.msra.mxu0 0.0
    %241 = vmatprep.subr.mxu0 0.0
    %242 = vmatpush1.msra.mxu0 0.0
    %243 = vmatprep.subr.mxu0 0.0
    %244 = vmatpush1.msra.mxu0 0.0
    %245 = vmatprep.subr.mxu0 0.0
    %246 = vmatpush1.msra.mxu0 0.0
    %247 = vmatprep.subr.mxu0 0.0
    %248 = vmatpush1.msra.mxu0 0.0
    %249 = vmatprep.subr.mxu0 0.0
    %250 = vmatpush1.msra.mxu0 0.0
    %251 = vmatprep.mubr.f32.mxu0 0.0
    %252 = vmatmul.mubr.f32.gmra.mrb[0].mxu0 %v168
    %v253 = vpop.f32.mrb[0].mxu0
    %v254 = vadd.f32 0.0, %v253
    %v255 = vpop.f32.mrb[0].mxu0
    %256 = vmatprep.mubr.f32.mxu0 0.0
    %257 = vmatmul.mubr.f32.gmra.mrb[0].mxu0 %v169
    %v258 = vpop.f32.mrb[0].mxu0
    %v259 = vadd.f32 0.0, %v258
    %v260 = vpop.f32.mrb[0].mxu0
    %261 = vmatprep.mubr.f32.mxu0 0.0
    %262 = vmatmul.mubr.f32.gmra.mrb[0].mxu0 %v170
    %v263 = vpop.f32.mrb[0].mxu0
    %v264 = vadd.f32 0.0, %v263
    %v265 = vpop.f32.mrb[0].mxu0
    %266 = vdwg.mxu0
    %v267 = vmax.f32 %v254, 1e-09
    %v268 = vmax.f32 %v259, 1e-09
    %v269 = vmax.f32 %v264, 1e-09
    %v270 = vmin.f32 %v267, 1e+09
    %v271 = vmin.f32 %v268, 1e+09
    %v272 = vmin.f32 %v269, 1e+09
    %v273 = vlog2.pop %v270
    %v274 = vmul.f32 %v273, 0.6931472
    %v275 = vlog2.pop %v271
    %v276 = vmul.f32 %v275, 0.6931472
    %v277 = vlog2.pop %v272
    %v278 = vmul.f32 %v277, 0.6931472
    %279 = vst [vmem:[#allocation8] sm:$0xff] %v274
    %280 = vst [vmem:[#allocation8 + $0x8] sm:$0xff] %v276
    %281 = vst [vmem:[#allocation8 + $0x10] sm:$0xff] %v278
    // Predicated region
    $region26: #{tpu_custom_call.1} parent=1 // pred_check
      _
    $region27: #{tpu_custom_call.1} parent=1 // pred_check_branch
      %283 = sbr.rel (0) target = $region29
    $region28: #{tpu_custom_call.1} parent=1 // pred_region
      %s285 = ssub.s32 384, 384
      %286 = vsyncadd [#allocation4], %s285
      %s287 = sshll.u32 [#allocation8], 4
      %s288 = int_to_ptr.vmem [resolvable:$true] %s287
      %293 = dma.vmem_to_hbm [thread:$0]  %s288, 384, %s3, [#allocation4], 128, 128, 8
    $region29: #{tpu_custom_call.1} parent=1 // pred_fallthru
      _
    // Predicated region
    $region30: #{tpu_custom_call.1} parent=1 // pred_check
      _
    $region31: #{tpu_custom_call.1} parent=1 // pred_check_branch
      %295 = sbr.rel (0) target = $region33
    $region32: #{tpu_custom_call.1} parent=1 // pred_region
      %296 = dma.done [#allocation4], 384
    $region33: #{tpu_custom_call.1} parent=1 // pred_fallthru
      _
    %297 = vsyncpa [#allocation3], 1
    %298 = vsyncpa [#allocation6], 1
    %299 = vsyncpa [#allocation4], 1

</llo_original>
